<compile_context>
chip_gen: v7x
topology: tpu7x:2x2x1
jax: 0.10.0
libtpu: 0.0.40
codegen_flags: <defaults>
</compile_context>

<pallas_src>
import functools

import jax
import jax.numpy as jnp
from jax.experimental import pallas as pl
from jax.experimental.pallas import tpu as pltpu


def _powf(x, e):
    """x ** e; integer-valued exponents take the integer_pow path (robust on Mosaic)."""
    ef = float(e)
    if ef.is_integer():
        return x ** int(ef)
    return jnp.exp(ef * jnp.log(x))


def _ceil_div(a, b):
    return -(-a // b)


def _round_up(a, b):
    return _ceil_div(a, b) * b


def _device_kind():
    try:
        return jax.devices()[0].device_kind.lower()
    except Exception:
        return ""


def _default_num_splits():
    """2 on v7x (2 TensorCores / chip), 1 elsewhere.  Correct for any value."""
    kind = _device_kind()
    return 2 if ("v7" in kind or "7x" in kind) else 1


def _vmem_capacity_bytes():
    """Per-TensorCore VMEM capacity; generation-aware with a safe fallback."""
    try:
        cap = int(pltpu.get_tpu_info().vmem_capacity_bytes)
        if cap > 0:
            return cap
    except Exception:
        pass
    kind = _device_kind()
    if "v7" in kind or "7x" in kind:
        return 64 << 20
    return 128 << 20


def _combined_focal_kernel(logits_ref, labels_ref, weights_ref,
                           cat_ref, stats_ref,
                           acc_cat, acc_tp, acc_sp, acc_cnt,
                           *, gamma_cf, eps, hw, needs_mask):
    step = pl.program_id(1)
    n_steps = pl.num_programs(1)
    tn = acc_cat.shape[1]

    @pl.when(step == 0)
    def _():
        acc_cat[...] = jnp.zeros_like(acc_cat)
        acc_tp[...] = jnp.zeros_like(acc_tp)
        acc_sp[...] = jnp.zeros_like(acc_sp)
        acc_cnt[...] = jnp.zeros_like(acc_cnt)

    x = logits_ref[...].astype(jnp.float32)     # (D, C, TN)
    lbl = labels_ref[...]                       # (D, TN) int32
    w = weights_ref[...].astype(jnp.float32)    # (D, C, TN)

    if needs_mask:
        # Ragged last block / clamped over-range split steps: lanes beyond `hw`
        # hold unspecified data (possibly NaN/Inf).  Sanitize with jnp.where
        # (NOT a 0/1 multiply: 0 * NaN = NaN).
        base = (pl.program_id(0) * n_steps + step) * tn
        lane = jax.lax.broadcasted_iota(jnp.int32, (1, tn), 1)
        valid2 = (base + lane) < hw             # (1, TN) bool
        valid3 = valid2[:, None, :]             # (1, 1, TN)
        x = jnp.where(valid3, x, 0.0)
        w = jnp.where(valid3, w, 0.0)           # zero weights -> no cat contribution
        lbl = jnp.where(valid2, lbl, 0)

    # softmax over the class axis (torch.softmax(dim=1));
    # one reciprocal per pixel instead of C divides.
    m = jnp.max(x, axis=1, keepdims=True)
    e = jnp.exp(x - m)
    p = e * (1.0 / jnp.sum(e, axis=1, keepdims=True))

    # one-hot of the labels along the class axis
    cls = jax.lax.broadcasted_iota(jnp.int32, x.shape, 1)
    t = (lbl[:, None, :] == cls).astype(jnp.float32)

    # probability at the label class (exact: non-label products are 0);
    # p*t is reused below for the Tversky tp statistic.
    pt = p * t                                  # (D, C, TN)
    p_lbl = jnp.sum(pt, axis=1)                 # (D, TN)

    # categorical focal loss with suppress_bkg=True, pruned by the one-hot:
    #   class 0:   (1 - p0)**(1/gamma) * (-log2(p0 + eps))   (p0 == p_lbl there)
    #   class >=1: -log2(p_lbl + eps)
    neg_log = -jnp.log2(p_lbl + eps)            # (D, TN)
    mod = jnp.where(lbl == 0, _powf(1.0 - p_lbl, gamma_cf), jnp.float32(1.0))
    s = mod * neg_log                           # (D, TN) == (C, TN) since C == D

    # reproduce the PyTorch broadcast weights(D,C,N) * s(C,N) (requires C == D):
    # contract weights over D first, then one (C,TN) multiply.
    w_d = jnp.sum(w, axis=0)                    # (C, TN)  (zero on invalid lanes)
    acc_cat[...] += w_d * s

    # per-class Tversky statistics: tp, sum(p), count; fp/fn derived in epilogue.
    tp_l = jnp.sum(pt, axis=0)                  # (C, TN)
    sp_l = jnp.sum(p, axis=0)                   # (C, TN)
    cnt_l = jnp.sum(t, axis=0)                  # (C, TN)

    if needs_mask:
        tp_l = jnp.where(valid2, tp_l, 0.0)
        sp_l = jnp.where(valid2, sp_l, 0.0)
        cnt_l = jnp.where(valid2, cnt_l, 0.0)

    acc_tp[...] += tp_l
    acc_sp[...] += sp_l
    acc_cnt[...] += cnt_l

    # collapse lane-wide accumulators only on the last step of this split.
    @pl.when(step == n_steps - 1)
    def _():
        tot = jnp.sum(acc_cat[...], axis=1, keepdims=True)     # (C, 1)
        tot = jnp.sum(tot, axis=0, keepdims=True)              # (1, 1)
        cat_ref[...] = tot[None]                                # (1, 1, 1)
        tp = jnp.sum(acc_tp[...], axis=1, keepdims=True)        # (C, 1)
        sp = jnp.sum(acc_sp[...], axis=1, keepdims=True)        # (C, 1)
        cnt = jnp.sum(acc_cnt[...], axis=1, keepdims=True)      # (C, 1)
        stats_ref[...] = jnp.concatenate([tp, sp, cnt], axis=1)[None]  # (1, C, 3)


def combined_focal_loss(y_pred, y_true, weights, weights_list, *,
                        alpha=0.6, lmbd=0.5, gamma=0.5, eps=1e-6,
                        target_steps_per_split=16,
                        num_splits=None):
    """JAX/Pallas equivalent of CombinedFocalLoss(alpha, lmbd, gamma).forward."""
    # alpha / lmbd are stored but unused in the PyTorch forward; kept for parity.
    D, C, H, W = y_pred.shape
    if C != D:
        raise ValueError("The reference PyTorch broadcast in CategoricalFocalLoss "
                         "requires C == D.")
    hw = H * W

    if num_splits is None:
        num_splits = _default_num_splits()
    num_splits = max(1, int(num_splits))

    # --- generation-aware lane-tile selection ------------------------------
    vmem_cap = _vmem_capacity_bytes()
    input_budget = int(vmem_cap * 0.45)         # ~57 MiB on 128 MiB parts, ~28 MiB on v7x

    xb = jnp.dtype(y_pred.dtype).itemsize
    wb = jnp.dtype(weights.dtype).itemsize
    sub_x = 8 * max(1, 4 // xb)                 # sublane granule (f32: 8, bf16: 16)
    sub_w = 8 * max(1, 4 // wb)
    # real (sublane-padded) VMEM bytes per lane column:
    #   double-buffered input blocks + four f32 accumulator scratches.
    per_lane = (2 * (D * _round_up(C, sub_x) * xb
                     + D * _round_up(C, sub_w) * wb
                     + _round_up(D, 8) * 4)
                + 4 * _round_up(C, 8) * 4)

    n_lane128 = _ceil_div(hw, 128)
    tn_budget = max(128, (input_budget // per_lane) // 128 * 128)
    tn_target = _ceil_div(n_lane128, target_steps_per_split * num_splits) * 128
    tn = int(min(tn_budget, max(128, tn_target), n_lane128 * 128))

    n_blocks = _ceil_div(hw, tn)
    num_splits = max(1, min(num_splits, n_blocks))
    steps_per_split = _ceil_div(n_blocks, num_splits)
    total_steps = steps_per_split * num_splits
    needs_mask = (hw % tn != 0) or (total_steps != n_blocks)

    # reshape (no transpose, no pad) to (D, C, N) / (D, N); cast in-kernel.
    x = y_pred.reshape(D, C, hw)
    lbl = y_true.reshape(D, hw).astype(jnp.int32)
    w = weights.reshape(D, C, hw)

    gamma_cf = 1.0 / gamma          # CategoricalFocalLoss(gamma=1/gamma)
    kernel = functools.partial(_combined_focal_kernel, gamma_cf=gamma_cf, eps=eps,
                               hw=hw, needs_mask=needs_mask)

    spp = steps_per_split
    if total_steps > n_blocks:
        # Over-range steps of the last split re-read the last valid block
        # (cheap DMA dedup) and contribute zero via the in-kernel mask.
        last = n_blocks - 1
        lane_idx = lambda s, n: jnp.minimum(s * spp + n, last)
    else:
        lane_idx = lambda s, n: s * spp + n

    vmem_limit = int(min(vmem_cap * 3 // 4,
                         max(32 << 20, per_lane * tn + (16 << 20))))

    cat_out, stats_out = pl.pallas_call(
        kernel,
        out_shape=(jax.ShapeDtypeStruct((num_splits, 1, 1), jnp.float32),
                   jax.ShapeDtypeStruct((num_splits, C, 3), jnp.float32)),
        grid=(num_splits, steps_per_split),
        in_specs=[pl.BlockSpec((D, C, tn), lambda s, n: (0, 0, lane_idx(s, n))),
                  pl.BlockSpec((D, tn), lambda s, n: (0, lane_idx(s, n))),
                  pl.BlockSpec((D, C, tn), lambda s, n: (0, 0, lane_idx(s, n)))],
        out_specs=(pl.BlockSpec((1, 1, 1), lambda s, n: (s, 0, 0)),
                   pl.BlockSpec((1, C, 3), lambda s, n: (s, 0, 0))),
        scratch_shapes=[pltpu.VMEM((C, tn), jnp.float32),   # acc_cat
                        pltpu.VMEM((C, tn), jnp.float32),   # acc_tp
                        pltpu.VMEM((C, tn), jnp.float32),   # acc_sum_p
                        pltpu.VMEM((C, tn), jnp.float32)],  # acc_count
        compiler_params=pltpu.CompilerParams(
            dimension_semantics=("parallel", "arbitrary"),
            vmem_limit_bytes=vmem_limit),
    )(x, lbl, w)

    # --- O(C) epilogue (plain JAX glue) ---
    cat_focal = jnp.sum(cat_out) / (D * C * H * W)       # torch.mean over (D,C,H,W)

    stats = jnp.sum(stats_out, axis=0)                   # (C, 3)
    tp, sp, cnt = stats[:, 0], stats[:, 1], stats[:, 2]
    fp = sp - tp                                         # sum((1-t)*p)
    fn = cnt - tp                                        # sum(t*(1-p))
    wl = weights_list.astype(jnp.float32)
    tversky = tp / (tp + wl * fn + (1.0 - wl) * fp + eps)
    bkg_tv = (1.0 - tversky[0])[None]
    one_m = 1.0 - tversky[1:]
    # NOTE: one_m * one_m**(-gamma) is NaN at tversky == 1 — parity with torch.
    fg_tv = one_m * one_m ** (-gamma)
    focal_tversky = jnp.mean(jnp.concatenate([bkg_tv, fg_tv], axis=0))

    return cat_focal + focal_tversky


def reference_loss(y_pred, y_true, weights, weights_list, *, gamma=0.5, eps=1e-6):
    """Pure-JAX transliteration of the PyTorch module (for verification)."""
    p = jax.nn.softmax(y_pred.astype(jnp.float32), axis=1)
    D, C, H, W = y_pred.shape
    onehot = jax.nn.one_hot(y_true, C, dtype=jnp.float32).transpose(0, 3, 1, 2)
    ce = -onehot * jnp.log2(p + eps)
    gamma_cf = 1.0 / gamma
    bkg = (_powf(1.0 - p[:, 0], gamma_cf) * ce[:, 0])[:, None]
    focal = jnp.concatenate([bkg, ce[:, 1:]], axis=1)
    s = jnp.sum(focal, axis=1)                      # (D, H, W)
    cat = jnp.mean(weights * s)                     # same broadcast as torch (C == D)
    tp = jnp.sum(p * onehot, axis=(0, 2, 3))
    fp = jnp.sum((1.0 - onehot) * p, axis=(0, 2, 3))
    fn = jnp.sum(onehot * (1.0 - p), axis=(0, 2, 3))
    tv = tp / (tp + weights_list * fn + (1.0 - weights_list) * fp + eps)
    bkg_tv = (1.0 - tv[0])[None]
    fg_tv = (1.0 - tv[1:]) * (1.0 - tv[1:]) ** (-gamma)
    return cat + jnp.mean(jnp.concatenate([bkg_tv, fg_tv], axis=0))


def _run_case(key, D, C, H, W, **kw):
    k1, k2, k3, k4 = jax.random.split(key, 4)
    y_pred = jax.random.normal(k1, (D, C, H, W), dtype=jnp.float32)
    y_true = jax.random.randint(k2, (D, H, W), 0, C, dtype=jnp.int32)
    weights = jax.random.uniform(k3, (D, C, H, W), dtype=jnp.float32,
                                 minval=0.1, maxval=2.0)
    weights_list = jax.random.uniform(k4, (C,), dtype=jnp.float32,
                                      minval=0.3, maxval=0.9)
    loss = combined_focal_loss(y_pred, y_true, weights, weights_list, **kw)
    loss = jax.block_until_ready(loss)
    ref = reference_loss(y_pred, y_true, weights, weights_list)
    assert jnp.allclose(loss, ref, rtol=1e-4, atol=1e-5), (float(loss), float(ref))


if __name__ == "__main__":
    key = jax.random.PRNGKey(0)
    k_a, k_b = jax.random.split(key, 2)

    # small shapes; C == D is required by the original PyTorch broadcasting.
    # case 1: lane-aligned single block, default split count.
    _run_case(k_a, 4, 4, 16, 16)
    # case 2: ragged hw (288 lanes) + forced 2-way split with an odd block
    # count — exercises the in-kernel masking and the clamped over-range step.
    _run_case(k_b, 4, 4, 16, 18, num_splits=2)

    print("KERNEL_OK")
</pallas_src>

<mosaic_0001>
module attributes {stable_mosaic.version = 11 : i64} {
  func.func @_combined_focal_kernel(%arg0: i32, %arg1: i32, %arg2: memref<4x4x128xf32, #tpu.memory_space<vmem>>, %arg3: memref<4x128xi32, #tpu.memory_space<vmem>>, %arg4: memref<4x4x128xf32, #tpu.memory_space<vmem>>, %arg5: memref<1x1x1xf32, #tpu.memory_space<vmem>>, %arg6: memref<1x4x3xf32, #tpu.memory_space<vmem>>, %arg7: memref<4x128xf32, #tpu.memory_space<vmem>>, %arg8: memref<4x128xf32, #tpu.memory_space<vmem>>, %arg9: memref<4x128xf32, #tpu.memory_space<vmem>>, %arg10: memref<4x128xf32, #tpu.memory_space<vmem>>) attributes {dimension_semantics = [#tpu.dimension_semantics<parallel>, #tpu.dimension_semantics<arbitrary>], iteration_bounds = array<i64: 1, 2>, scalar_prefetch = 0 : i64, scratch_operands = 4 : i64, tpu.core_type = #tpu.core_type<tc>, window_params = [{transform_indices = @transform_0, window_bounds = array<i64: 4, 4, 128>}, {transform_indices = @transform_1, window_bounds = array<i64: 4, 128>}, {transform_indices = @transform_2, window_bounds = array<i64: 4, 4, 128>}, {transform_indices = @transform_3, window_bounds = array<i64: 1, 1, 1>}, {transform_indices = @transform_4, window_bounds = array<i64: 1, 4, 3>}]} {
    %c0_i32 = arith.constant 0 : i32
    %0 = arith.cmpi eq, %arg1, %c0_i32 : i32
    %1 = arith.extui %0 : i1 to i32
    %c0_i32_0 = arith.constant 0 : i32
    %2 = arith.cmpi ne, %1, %c0_i32_0 : i32
    scf.if %2 {
      %cst_38 = arith.constant 0.000000e+00 : f32
      %61 = vector.broadcast %cst_38 : f32 to vector<4x128xf32>
      %c0_39 = arith.constant 0 : index
      %c0_40 = arith.constant 0 : index
      %62 = vector.load %arg7[%c0_39, %c0_40] : memref<4x128xf32, #tpu.memory_space<vmem>>, vector<4x128xf32>
      tpu.vector_store %arg7[%c0_39, %c0_40], %61 {strides = array<i32>} : memref<4x128xf32, #tpu.memory_space<vmem>>, vector<4x128xf32>,
      %cst_41 = arith.constant 0.000000e+00 : f32
      %63 = vector.broadcast %cst_41 : f32 to vector<4x128xf32>
      %c0_42 = arith.constant 0 : index
      %c0_43 = arith.constant 0 : index
      %64 = vector.load %arg8[%c0_42, %c0_43] : memref<4x128xf32, #tpu.memory_space<vmem>>, vector<4x128xf32>
      tpu.vector_store %arg8[%c0_42, %c0_43], %63 {strides = array<i32>} : memref<4x128xf32, #tpu.memory_space<vmem>>, vector<4x128xf32>,
      %cst_44 = arith.constant 0.000000e+00 : f32
      %65 = vector.broadcast %cst_44 : f32 to vector<4x128xf32>
      %c0_45 = arith.constant 0 : index
      %c0_46 = arith.constant 0 : index
      %66 = vector.load %arg9[%c0_45, %c0_46] : memref<4x128xf32, #tpu.memory_space<vmem>>, vector<4x128xf32>
      tpu.vector_store %arg9[%c0_45, %c0_46], %65 {strides = array<i32>} : memref<4x128xf32, #tpu.memory_space<vmem>>, vector<4x128xf32>,
      %cst_47 = arith.constant 0.000000e+00 : f32
      %67 = vector.broadcast %cst_47 : f32 to vector<4x128xf32>
      %c0_48 = arith.constant 0 : index
      %c0_49 = arith.constant 0 : index
      %68 = vector.load %arg10[%c0_48, %c0_49] : memref<4x128xf32, #tpu.memory_space<vmem>>, vector<4x128xf32>
      tpu.vector_store %arg10[%c0_48, %c0_49], %67 {strides = array<i32>} : memref<4x128xf32, #tpu.memory_space<vmem>>, vector<4x128xf32>,
    } else {
    }
    %c0 = arith.constant 0 : index
    %c0_1 = arith.constant 0 : index
    %c0_2 = arith.constant 0 : index
    %3 = vector.load %arg2[%c0, %c0_1, %c0_2] : memref<4x4x128xf32, #tpu.memory_space<vmem>>, vector<4x4x128xf32>
    %c0_3 = arith.constant 0 : index
    %c0_4 = arith.constant 0 : index
    %4 = vector.load %arg3[%c0_3, %c0_4] : memref<4x128xi32, #tpu.memory_space<vmem>>, vector<4x128xi32>
    %c0_5 = arith.constant 0 : index
    %c0_6 = arith.constant 0 : index
    %c0_7 = arith.constant 0 : index
    %5 = vector.load %arg4[%c0_5, %c0_6, %c0_7] : memref<4x4x128xf32, #tpu.memory_space<vmem>>, vector<4x4x128xf32>
    %cst = arith.constant dense<0xFF800000> : vector<4x128xf32>
    %6 = vector.multi_reduction <maximumf>, %3, %cst [1] : vector<4x4x128xf32> to vector<4x128xf32>
    %7 = vector.shape_cast %6 : vector<4x128xf32> to vector<4x1x128xf32>
    %8 = vector.broadcast %7 : vector<4x1x128xf32> to vector<4x4x128xf32>
    %9 = arith.subf %3, %8 : vector<4x4x128xf32>
    %10 = math.exp %9 : vector<4x4x128xf32>
    %cst_8 = arith.constant dense<0.000000e+00> : vector<4x128xf32>
    %11 = vector.multi_reduction <add>, %10, %cst_8 [1] : vector<4x4x128xf32> to vector<4x128xf32>
    %12 = vector.shape_cast %11 : vector<4x128xf32> to vector<4x1x128xf32>
    %cst_9 = arith.constant 1.000000e+00 : f32
    %13 = vector.broadcast %cst_9 : f32 to vector<4x1x128xf32>
    %14 = arith.divf %13, %12 : vector<4x1x128xf32>
    %15 = vector.broadcast %14 : vector<4x1x128xf32> to vector<4x4x128xf32>
    %16 = arith.mulf %10, %15 : vector<4x4x128xf32>
    %17 = tpu.iota {dimensions = array<i32: 1>} : vector<4x4x128xi32>
    %18 = vector.shape_cast %4 : vector<4x128xi32> to vector<4x1x128xi32>
    %19 = vector.broadcast %18 : vector<4x1x128xi32> to vector<4x4x128xi32>
    %20 = arith.cmpi eq, %19, %17 : vector<4x4x128xi32>
    %21 = arith.extui %20 : vector<4x4x128xi1> to vector<4x4x128xi32>
    %22 = arith.sitofp %21 : vector<4x4x128xi32> to vector<4x4x128xf32>
    %23 = arith.mulf %16, %22 : vector<4x4x128xf32>
    %cst_10 = arith.constant dense<0.000000e+00> : vector<4x128xf32>
    %24 = vector.multi_reduction <add>, %23, %cst_10 [1] : vector<4x4x128xf32> to vector<4x128xf32>
    %cst_11 = arith.constant 9.99999997E-7 : f32
    %25 = vector.broadcast %cst_11 : f32 to vector<4x128xf32>
    %26 = arith.addf %24, %25 : vector<4x128xf32>
    %27 = math.log %26 : vector<4x128xf32>
    %cst_12 = arith.constant 2.000000e+00 : f32
    %28 = math.log %cst_12 : f32
    %29 = vector.broadcast %28 : f32 to vector<4x128xf32>
    %30 = arith.divf %27, %29 : vector<4x128xf32>
    %cst_13 = arith.constant 0.000000e+00 : f32
    %31 = vector.broadcast %cst_13 : f32 to vector<4x128xf32>
    %32 = arith.subf %31, %30 : vector<4x128xf32>
    %c0_i32_14 = arith.constant 0 : i32
    %33 = vector.broadcast %c0_i32_14 : i32 to vector<4x128xi32>
    %34 = arith.cmpi eq, %4, %33 : vector<4x128xi32>
    %cst_15 = arith.constant 1.000000e+00 : f32
    %35 = vector.broadcast %cst_15 : f32 to vector<4x128xf32>
    %36 = arith.subf %35, %24 : vector<4x128xf32>
    %37 = arith.mulf %36, %36 : vector<4x128xf32>
    %cst_16 = arith.constant 1.000000e+00 : f32
    %38 = vector.broadcast %cst_16 : f32 to vector<4x128xf32>
    %39 = arith.select %34, %37, %38 : vector<4x128xi1>, vector<4x128xf32>
    %40 = arith.mulf %39, %32 : vector<4x128xf32>
    %cst_17 = arith.constant dense<0.000000e+00> : vector<4x128xf32>
    %41 = vector.multi_reduction <add>, %5, %cst_17 [0] : vector<4x4x128xf32> to vector<4x128xf32>
    %c0_18 = arith.constant 0 : index
    %c0_19 = arith.constant 0 : index
    %42 = vector.load %arg7[%c0_18, %c0_19] : memref<4x128xf32, #tpu.memory_space<vmem>>, vector<4x128xf32>
    %43 = arith.mulf %41, %40 : vector<4x128xf32>
    %44 = arith.addf %42, %43 : vector<4x128xf32>
    %c0_20 = arith.constant 0 : index
    %c0_21 = arith.constant 0 : index
    %45 = vector.load %arg7[%c0_20, %c0_21] : memref<4x128xf32, #tpu.memory_space<vmem>>, vector<4x128xf32>
    tpu.vector_store %arg7[%c0_20, %c0_21], %44 {strides = array<i32>} : memref<4x128xf32, #tpu.memory_space<vmem>>, vector<4x128xf32>,
    %cst_22 = arith.constant dense<0.000000e+00> : vector<4x128xf32>
    %46 = vector.multi_reduction <add>, %23, %cst_22 [0] : vector<4x4x128xf32> to vector<4x128xf32>
    %cst_23 = arith.constant dense<0.000000e+00> : vector<4x128xf32>
    %47 = vector.multi_reduction <add>, %16, %cst_23 [0] : vector<4x4x128xf32> to vector<4x128xf32>
    %cst_24 = arith.constant dense<0.000000e+00> : vector<4x128xf32>
    %48 = vector.multi_reduction <add>, %22, %cst_24 [0] : vector<4x4x128xf32> to vector<4x128xf32>
    %c0_25 = arith.constant 0 : index
    %c0_26 = arith.constant 0 : index
    %49 = vector.load %arg8[%c0_25, %c0_26] : memref<4x128xf32, #tpu.memory_space<vmem>>, vector<4x128xf32>
    %50 = arith.addf %49, %46 : vector<4x128xf32>
    %c0_27 = arith.constant 0 : index
    %c0_28 = arith.constant 0 : index
    %51 = vector.load %arg8[%c0_27, %c0_28] : memref<4x128xf32, #tpu.memory_space<vmem>>, vector<4x128xf32>
    tpu.vector_store %arg8[%c0_27, %c0_28], %50 {strides = array<i32>} : memref<4x128xf32, #tpu.memory_space<vmem>>, vector<4x128xf32>,
    %c0_29 = arith.constant 0 : index
    %c0_30 = arith.constant 0 : index
    %52 = vector.load %arg9[%c0_29, %c0_30] : memref<4x128xf32, #tpu.memory_space<vmem>>, vector<4x128xf32>
    %53 = arith.addf %52, %47 : vector<4x128xf32>
    %c0_31 = arith.constant 0 : index
    %c0_32 = arith.constant 0 : index
    %54 = vector.load %arg9[%c0_31, %c0_32] : memref<4x128xf32, #tpu.memory_space<vmem>>, vector<4x128xf32>
    tpu.vector_store %arg9[%c0_31, %c0_32], %53 {strides = array<i32>} : memref<4x128xf32, #tpu.memory_space<vmem>>, vector<4x128xf32>,
    %c0_33 = arith.constant 0 : index
    %c0_34 = arith.constant 0 : index
    %55 = vector.load %arg10[%c0_33, %c0_34] : memref<4x128xf32, #tpu.memory_space<vmem>>, vector<4x128xf32>
    %56 = arith.addf %55, %48 : vector<4x128xf32>
    %c0_35 = arith.constant 0 : index
    %c0_36 = arith.constant 0 : index
    %57 = vector.load %arg10[%c0_35, %c0_36] : memref<4x128xf32, #tpu.memory_space<vmem>>, vector<4x128xf32>
    tpu.vector_store %arg10[%c0_35, %c0_36], %56 {strides = array<i32>} : memref<4x128xf32, #tpu.memory_space<vmem>>, vector<4x128xf32>,
    %c1_i32 = arith.constant 1 : i32
    %58 = arith.cmpi eq, %arg1, %c1_i32 : i32
    %59 = arith.extui %58 : i1 to i32
    %c0_i32_37 = arith.constant 0 : i32
    %60 = arith.cmpi ne, %59, %c0_i32_37 : i32
    scf.if %60 {
      %c0_38 = arith.constant 0 : index
      %c0_39 = arith.constant 0 : index
      %61 = vector.load %arg7[%c0_38, %c0_39] : memref<4x128xf32, #tpu.memory_space<vmem>>, vector<4x128xf32>
      %cst_40 = arith.constant dense<0.000000e+00> : vector<4xf32>
      %62 = vector.multi_reduction <add>, %61, %cst_40 [1] : vector<4x128xf32> to vector<4xf32>
      %63 = vector.shape_cast %62 : vector<4xf32> to vector<4x1xf32>
      %cst_41 = arith.constant dense<0.000000e+00> : vector<1xf32>
      %64 = vector.multi_reduction <add>, %63, %cst_41 [0] : vector<4x1xf32> to vector<1xf32>
      %65 = vector.shape_cast %64 : vector<1xf32> to vector<1x1xf32>
      %66 = vector.shape_cast %65 : vector<1x1xf32> to vector<1x1x1xf32>
      %c0_42 = arith.constant 0 : index
      %c0_43 = arith.constant 0 : index
      %c0_44 = arith.constant 0 : index
      %67 = vector.load %arg5[%c0_42, %c0_43, %c0_44] : memref<1x1x1xf32, #tpu.memory_space<vmem>>, vector<1x1x1xf32>
      tpu.vector_store %arg5[%c0_42, %c0_43, %c0_44], %66 {strides = array<i32>} : memref<1x1x1xf32, #tpu.memory_space<vmem>>, vector<1x1x1xf32>,
      %c0_45 = arith.constant 0 : index
      %c0_46 = arith.constant 0 : index
      %68 = vector.load %arg8[%c0_45, %c0_46] : memref<4x128xf32, #tpu.memory_space<vmem>>, vector<4x128xf32>
      %cst_47 = arith.constant dense<0.000000e+00> : vector<4xf32>
      %69 = vector.multi_reduction <add>, %68, %cst_47 [1] : vector<4x128xf32> to vector<4xf32>
      %70 = vector.shape_cast %69 : vector<4xf32> to vector<4x1xf32>
      %c0_48 = arith.constant 0 : index
      %c0_49 = arith.constant 0 : index
      %71 = vector.load %arg9[%c0_48, %c0_49] : memref<4x128xf32, #tpu.memory_space<vmem>>, vector<4x128xf32>
      %cst_50 = arith.constant dense<0.000000e+00> : vector<4xf32>
      %72 = vector.multi_reduction <add>, %71, %cst_50 [1] : vector<4x128xf32> to vector<4xf32>
      %73 = vector.shape_cast %72 : vector<4xf32> to vector<4x1xf32>
      %c0_51 = arith.constant 0 : index
      %c0_52 = arith.constant 0 : index
      %74 = vector.load %arg10[%c0_51, %c0_52] : memref<4x128xf32, #tpu.memory_space<vmem>>, vector<4x128xf32>
      %cst_53 = arith.constant dense<0.000000e+00> : vector<4xf32>
      %75 = vector.multi_reduction <add>, %74, %cst_53 [1] : vector<4x128xf32> to vector<4xf32>
      %76 = vector.shape_cast %75 : vector<4xf32> to vector<4x1xf32>
      %77 = tpu.concatenate %70, %73, %76 in 1 : vector<4x1xf32>, vector<4x1xf32>, vector<4x1xf32> -> vector<4x3xf32>
      %78 = vector.shape_cast %77 : vector<4x3xf32> to vector<1x4x3xf32>
      %c0_54 = arith.constant 0 : index
      %c0_55 = arith.constant 0 : index
      %c0_56 = arith.constant 0 : index
      %79 = vector.load %arg6[%c0_54, %c0_55, %c0_56] : memref<1x4x3xf32, #tpu.memory_space<vmem>>, vector<1x4x3xf32>
      tpu.vector_store %arg6[%c0_54, %c0_55, %c0_56], %78 {strides = array<i32>} : memref<1x4x3xf32, #tpu.memory_space<vmem>>, vector<1x4x3xf32>,
    } else {
    }
    return
  }
  func.func @transform_0(%arg0: i32, %arg1: i32) -> (i32, i32, i32) {
    %c2_i32 = arith.constant 2 : i32
    %0 = arith.muli %arg0, %c2_i32 : i32
    %1 = arith.addi %0, %arg1 : i32
    %c0_i32 = arith.constant 0 : i32
    %c0_i32_0 = arith.constant 0 : i32
    %c0_i32_1 = arith.constant 0 : i32
    return %c0_i32, %c0_i32_0, %1 : i32, i32, i32
  }
  func.func @transform_1(%arg0: i32, %arg1: i32) -> (i32, i32) {
    %c2_i32 = arith.constant 2 : i32
    %0 = arith.muli %arg0, %c2_i32 : i32
    %1 = arith.addi %0, %arg1 : i32
    %c0_i32 = arith.constant 0 : i32
    %c0_i32_0 = arith.constant 0 : i32
    return %c0_i32, %1 : i32, i32
  }
  func.func @transform_2(%arg0: i32, %arg1: i32) -> (i32, i32, i32) {
    %c2_i32 = arith.constant 2 : i32
    %0 = arith.muli %arg0, %c2_i32 : i32
    %1 = arith.addi %0, %arg1 : i32
    %c0_i32 = arith.constant 0 : i32
    %c0_i32_0 = arith.constant 0 : i32
    %c0_i32_1 = arith.constant 0 : i32
    return %c0_i32, %c0_i32_0, %1 : i32, i32, i32
  }
  func.func @transform_3(%arg0: i32, %arg1: i32) -> (i32, i32, i32) {
    %c0_i32 = arith.constant 0 : i32
    %c0_i32_0 = arith.constant 0 : i32
    %c0_i32_1 = arith.constant 0 : i32
    return %arg0, %c0_i32, %c0_i32_0 : i32, i32, i32
  }
  func.func @transform_4(%arg0: i32, %arg1: i32) -> (i32, i32, i32) {
    %c0_i32 = arith.constant 0 : i32
    %c0_i32_0 = arith.constant 0 : i32
    %c0_i32_1 = arith.constant 0 : i32
    return %arg0, %c0_i32, %c0_i32_0 : i32, i32, i32
  }
}

</mosaic_0001>

<llo_original>
// kernel: tpu_custom_call.1
$region0: #{tpu_custom_call.1}
  #allocation0 [shape = 'u32[]', space=smem, size = 0x4, offset = 0x4, fixed_abs, tag = 'smem constant byte address 0x4 - core index']
  #allocation1 [shape = 'u32[144,128]{1,0:T(1,128)}', space=vmem, size = 0x12000, scoped, tag = 'internal scratch']
  #allocation2 [shape = 'f32[4,128]{1,0:T(4,128)}', space=vmem, size = 0x800, scoped, tag = 'scratch operand']
  #allocation3 [shape = 'f32[4,128]{1,0:T(4,128)}', space=vmem, size = 0x800, scoped, tag = 'scratch operand']
  #allocation4 [shape = 'f32[4,128]{1,0:T(4,128)}', space=vmem, size = 0x800, scoped, tag = 'scratch operand']
  #allocation5 [shape = 'f32[4,128]{1,0:T(4,128)}', space=vmem, size = 0x800, scoped, tag = 'scratch operand']
  %s0 = inlined_call_operand.hbm [shape: f32[4,4,256], index: 0, kind: input, shape index: {}]
  %s1 = inlined_call_operand.hbm [shape: s32[4,256], index: 1, kind: input, shape index: {}]
  %s2 = inlined_call_operand.hbm [shape: f32[4,4,256], index: 2, kind: input, shape index: {}]
  %s3 = inlined_call_operand.hbm [shape: f32[1,1,1], index: 3, kind: output, shape index: {0}]
  %s4 = inlined_call_operand.vmem [shape: f32[1,4,3], index: 4, kind: output, shape index: {1}]
  %5 = xla_tuple %s3, %s4
  %s6 = sld [smem:[#allocation0]]
  $region73: #{tpu_custom_call.1} parent=0
    _
  %s8 = ssub.s32 1, %s6
  %s9 = scalar_select 0, %s8, %s6
  $region1: #{tpu_custom_call.1} parent=0
    #allocation6 [shape = 'u8[16384]{0}', space=vmem, size = 0x4000, scoped, tag = 'input window, operand 0']
    #allocation7 [shape = 's32[2]{0}', space=sflag, size = 0x8, scoped, tag = 'scoped memory for tpu_custom_call.1']
    #allocation8 [shape = 's32[2]{0}', space=sflag, size = 0x8, scoped, tag = 'scoped memory for tpu_custom_call.1']
    #allocation9 [shape = 'u8[4096]{0}', space=vmem, size = 0x1000, scoped, tag = 'input window, operand 1']
    #allocation10 [shape = 's32[2]{0}', space=sflag, size = 0x8, scoped, tag = 'scoped memory for tpu_custom_call.1']
    #allocation11 [shape = 'u8[16384]{0}', space=vmem, size = 0x4000, scoped, tag = 'input window, operand 2']
    #allocation12 [shape = 'u8[512]{0}', space=vmem, size = 0x400, scoped, tag = 'output window, operand 0, single buffered']
    %10 = vsyncpa [#allocation7], 0
    %s11 = scalar_lea.sflag [#allocation7], 1
    %12 = vsyncpa %s11, 0
    %13 = vsyncpa [#allocation10], 0
    %s14 = scalar_lea.sflag [#allocation10], 1
    %15 = vsyncpa %s14, 0
    %16 = vsyncpa [#allocation8], 0
    loop: start=0, step=1, limit=4
    $region2: #{tpu_custom_call.1} parent=1 // loop_pre_header
      _
    $region3: #{tpu_custom_call.1} parent=1 // loop_header
      %s18 = sphi 0, %s22
      %p19 = scmp.ge.s32.totalorder %s18, 4
      %s25 = sphi 0, %s37
      %s26 = sphi 0, %s33
      %s27 = sphi 0, %s25
      %s28 = sphi 0, %s26
      %s29 = sphi 0, %s27
      %s30 = sphi 0, %s28
      %s44 = sphi 0, %s46
      %s47 = sphi 0, %s44
      %s48 = sphi 0, %s47
      %s64 = sphi 0, %s48
      %s74 = sphi 0, %s76
      %s77 = sphi 0, %s74
      %s78 = sphi 0, %s77
      %s94 = sphi 0, %s78
      %s104 = sphi 0, %s106
      %s107 = sphi 0, %s104
      %s108 = sphi 0, %s107
      %s124 = sphi 0, %s108
      %s130 = sphi 0, %s132
      %s133 = sphi 0, %s130
      %s134 = sphi 0, %s133
      %s150 = sphi 0, %s134
      %s156 = sphi 0, %s158
      %s159 = sphi 0, %s156
      %s160 = sphi 0, %s159
      %s176 = sphi 0, %s160
    $region4: #{tpu_custom_call.1} parent=1 // loop_header_branch
      %21 = sbr.rel (%p19) target = $region8
    $region5: #{tpu_custom_call.1} parent=1 // loop_body
      %s23 = ssub.s32 %s18, 1
      %s24 = ssub.s32 %s18, 2
      %s31 = sadd.s32 1, %s26
      %p32 = scmp.ge.s32.totalorder %s31, 2
      %s33 = scalar_select %p32, 0, %s31
      %s34 = sadd.s32 1, %s25
      %s35 = scalar_select %p32, %s34, %s25
      %p36 = scmp.ge.s32.totalorder %s35, 1
      %s37 = scalar_select %p36, 0, %s35
      %s38 = smul.u32 %s25, 2
      %s39 = sadd.s32 %s38, %s26
      %s40 = smul.u32 %s37, 2
      %s41 = sadd.s32 %s40, %s33
      %s42 = ssub.s32 %s39, %s41
      %p43 = scmp.eq.s32.totalorder %s42, 0
      %s45 = sadd.s32 %s44, 1
      %s46 = scalar_select %p43, %s44, %s45
      %p49 = pneg %p43
      %p50 = scmp.eq.s32.totalorder %s18, 1
      %p51 = por %p49, %p50
      %p52 = scmp.ne.s32.totalorder %s44, %s47
      %p53 = scmp.eq.s32.totalorder %s18, 0
      %p54 = por %p52, %p53
      %p55 = scmp.ne.s32.totalorder %s44, %s47
      %p56 = scmp.eq.s32.totalorder %s23, 1
      %p57 = por %p55, %p56
      %p58 = scmp.ne.s32.totalorder %s47, %s48
      %p59 = scmp.eq.s32.totalorder %s23, 0
      %p60 = por %p58, %p59
      %p61 = scmp.ne.s32.totalorder %s47, %s48
      %p62 = scmp.eq.s32.totalorder %s24, 1
      %p63 = por %p61, %p62
      %p65 = scmp.ne.s32.totalorder %s48, %s64
      %p66 = scmp.eq.s32.totalorder %s24, 0
      %p67 = por %p65, %p66
      %s68 = smul.u32 %s25, 2
      %s69 = sadd.s32 %s68, %s26
      %s70 = smul.u32 %s37, 2
      %s71 = sadd.s32 %s70, %s33
      %s72 = ssub.s32 %s69, %s71
      %p73 = scmp.eq.s32.totalorder %s72, 0
      %s75 = sadd.s32 %s74, 1
      %s76 = scalar_select %p73, %s74, %s75
      %p79 = pneg %p73
      %p80 = scmp.eq.s32.totalorder %s18, 1
      %p81 = por %p79, %p80
      %p82 = scmp.ne.s32.totalorder %s74, %s77
      %p83 = scmp.eq.s32.totalorder %s18, 0
      %p84 = por %p82, %p83
      %p85 = scmp.ne.s32.totalorder %s74, %s77
      %p86 = scmp.eq.s32.totalorder %s23, 1
      %p87 = por %p85, %p86
      %p88 = scmp.ne.s32.totalorder %s77, %s78
      %p89 = scmp.eq.s32.totalorder %s23, 0
      %p90 = por %p88, %p89
      %p91 = scmp.ne.s32.totalorder %s77, %s78
      %p92 = scmp.eq.s32.totalorder %s24, 1
      %p93 = por %p91, %p92
      %p95 = scmp.ne.s32.totalorder %s78, %s94
      %p96 = scmp.eq.s32.totalorder %s24, 0
      %p97 = por %p95, %p96
      %s98 = smul.u32 %s25, 2
      %s99 = sadd.s32 %s98, %s26
      %s100 = smul.u32 %s37, 2
      %s101 = sadd.s32 %s100, %s33
      %s102 = ssub.s32 %s99, %s101
      %p103 = scmp.eq.s32.totalorder %s102, 0
      %s105 = sadd.s32 %s104, 1
      %s106 = scalar_select %p103, %s104, %s105
      %p109 = pneg %p103
      %p110 = scmp.eq.s32.totalorder %s18, 1
      %p111 = por %p109, %p110
      %p112 = scmp.ne.s32.totalorder %s104, %s107
      %p113 = scmp.eq.s32.totalorder %s18, 0
      %p114 = por %p112, %p113
      %p115 = scmp.ne.s32.totalorder %s104, %s107
      %p116 = scmp.eq.s32.totalorder %s23, 1
      %p117 = por %p115, %p116
      %p118 = scmp.ne.s32.totalorder %s107, %s108
      %p119 = scmp.eq.s32.totalorder %s23, 0
      %p120 = por %p118, %p119
      %p121 = scmp.ne.s32.totalorder %s107, %s108
      %p122 = scmp.eq.s32.totalorder %s24, 1
      %p123 = por %p121, %p122
      %p125 = scmp.ne.s32.totalorder %s108, %s124
      %p126 = scmp.eq.s32.totalorder %s24, 0
      %p127 = por %p125, %p126
      %s128 = ssub.s32 %s25, %s37
      %p129 = scmp.eq.s32.totalorder %s128, 0
      %s131 = sadd.s32 %s130, 1
      %s132 = scalar_select %p129, %s130, %s131
      %p135 = pneg %p129
      %p136 = scmp.eq.s32.totalorder %s18, 1
      %p137 = por %p135, %p136
      %p138 = scmp.ne.s32.totalorder %s130, %s133
      %p139 = scmp.eq.s32.totalorder %s18, 0
      %p140 = por %p138, %p139
      %p141 = scmp.ne.s32.totalorder %s130, %s133
      %p142 = scmp.eq.s32.totalorder %s23, 1
      %p143 = por %p141, %p142
      %p144 = scmp.ne.s32.totalorder %s133, %s134
      %p145 = scmp.eq.s32.totalorder %s23, 0
      %p146 = por %p144, %p145
      %p147 = scmp.ne.s32.totalorder %s133, %s134
      %p148 = scmp.eq.s32.totalorder %s24, 1
      %p149 = por %p147, %p148
      %p151 = scmp.ne.s32.totalorder %s134, %s150
      %p152 = scmp.eq.s32.totalorder %s24, 0
      %p153 = por %p151, %p152
      %s154 = ssub.s32 %s25, %s37
      %p155 = scmp.eq.s32.totalorder %s154, 0
      %s157 = sadd.s32 %s156, 1
      %s158 = scalar_select %p155, %s156, %s157
      %p161 = pneg %p155
      %p162 = scmp.eq.s32.totalorder %s18, 1
      %p163 = por %p161, %p162
      %p164 = scmp.ne.s32.totalorder %s156, %s159
      %p165 = scmp.eq.s32.totalorder %s18, 0
      %p166 = por %p164, %p165
      %p167 = scmp.ne.s32.totalorder %s156, %s159
      %p168 = scmp.eq.s32.totalorder %s23, 1
      %p169 = por %p167, %p168
      %p170 = scmp.ne.s32.totalorder %s159, %s160
      %p171 = scmp.eq.s32.totalorder %s23, 0
      %p172 = por %p170, %p171
      %p173 = scmp.ne.s32.totalorder %s159, %s160
      %p174 = scmp.eq.s32.totalorder %s24, 1
      %p175 = por %p173, %p174
      %p177 = scmp.ne.s32.totalorder %s160, %s176
      %p178 = scmp.eq.s32.totalorder %s24, 0
      %p179 = por %p177, %p178
      %p180 = scmp.le.s32.totalorder 1, %s18
      %p181 = scmp.lt.s32.totalorder %s18, 3
      %p182 = pnand %p180, %p181
      %p183 = pneg %p182
      // Predicated region
      $region9: #{tpu_custom_call.1} parent=5 // pred_check
        _
      $region10: #{tpu_custom_call.1} parent=5 // pred_check_branch
        %185 = sbr.rel (%p182) target = $region12
      $region11: #{tpu_custom_call.1} parent=5 // pred_region
        %s186 = ssub.s32 %s18, 1
      $region12: #{tpu_custom_call.1} parent=5 // pred_fallthru
        _
      %p187 = scmp.lt.s32.totalorder %s18, 2
      // Predicated region
      $region13: #{tpu_custom_call.1} parent=5 // pred_check
        %p188 = pneg %p187
      $region14: #{tpu_custom_call.1} parent=5 // pred_check_branch
        %190 = sbr.rel (%p188) target = $region16
      $region15: #{tpu_custom_call.1} parent=5 // pred_region
        // Predicated region
        $region17: #{tpu_custom_call.1} parent=15 // pred_check
          %p191 = pneg %p54
        $region18: #{tpu_custom_call.1} parent=15 // pred_check_branch
          %193 = sbr.rel (%p191) target = $region20
        $region19: #{tpu_custom_call.1} parent=15 // pred_region
          %s194 = sand.u32 %s44, 1
          %s195 = scalar_lea.sflag [#allocation7], %s194
          %s196 = sand.u32 %s44, 1
          %s197 = smul.addr %s196, 16
          %s198 = scalar_lea.vmem [#allocation6], %s197
          %s199 = smul.u32 %s25, 2
          %s200 = sadd.s32 %s199, %s26
          %s202 = ssub.s32 256, 256
          %203 = vsyncadd %s195, %s202
          %s204 = smul.addr %s200, 64
          %s205 = scalar_lea.hbm %s0, %s204
          %s206 = sshll.u32 %s198, 4
          %s207 = int_to_ptr.vmem [resolvable:$true] %s206
          %212 = dma.hbm_to_vmem [thread:$0]  %s205, 256, %s207, %s195, 128, 64, 4
        $region20: #{tpu_custom_call.1} parent=15 // pred_fallthru
          _
        // Predicated region
        $region21: #{tpu_custom_call.1} parent=15 // pred_check
          %p213 = pneg %p84
        $region22: #{tpu_custom_call.1} parent=15 // pred_check_branch
          %215 = sbr.rel (%p213) target = $region24
        $region23: #{tpu_custom_call.1} parent=15 // pred_region
          %s216 = sand.u32 %s18, 1
          %s217 = scalar_lea.sflag [#allocation10], %s216
          %s218 = sand.u32 %s74, 1
          %s219 = smul.addr %s218, 4
          %s220 = scalar_lea.vmem [#allocation9], %s219
          %s221 = smul.u32 %s25, 2
          %s222 = sadd.s32 %s221, %s26
          %s224 = ssub.s32 64, 64
          %225 = vsyncadd %s217, %s224
          %s226 = smul.addr %s222, 64
          %s227 = scalar_lea.hbm %s1, %s226
          %s229 = sshll.u32 %s220, 4
          %s230 = int_to_ptr.vmem [resolvable:$true] %s229
          %232 = dma.hbm_to_vmem [thread:$0]  %s227, 64, %s230, %s217
        $region24: #{tpu_custom_call.1} parent=15 // pred_fallthru
          _
        // Predicated region
        $region25: #{tpu_custom_call.1} parent=15 // pred_check
          %p233 = pneg %p114
        $region26: #{tpu_custom_call.1} parent=15 // pred_check_branch
          %235 = sbr.rel (%p233) target = $region28
        $region27: #{tpu_custom_call.1} parent=15 // pred_region
          %s236 = sand.u32 %s18, 1
          %s237 = scalar_lea.sflag [#allocation10], %s236
          %s238 = sand.u32 %s104, 1
          %s239 = smul.addr %s238, 16
          %s240 = scalar_lea.vmem [#allocation11], %s239
          %s241 = smul.u32 %s25, 2
          %s242 = sadd.s32 %s241, %s26
          %s244 = ssub.s32 256, 256
          %245 = vsyncadd %s237, %s244
          %s246 = smul.addr %s242, 64
          %s247 = scalar_lea.hbm %s2, %s246
          %s248 = sshll.u32 %s240, 4
          %s249 = int_to_ptr.vmem [resolvable:$true] %s248
          %254 = dma.hbm_to_vmem [thread:$0]  %s247, 256, %s249, %s237, 128, 64, 4
        $region28: #{tpu_custom_call.1} parent=15 // pred_fallthru
          _
      $region16: #{tpu_custom_call.1} parent=5 // pred_fallthru
        _
      %p255 = scmp.le.s32.totalorder 1, %s18
      %p256 = scmp.lt.s32.totalorder %s18, 3
      %p257 = pnand %p255, %p256
      %p258 = pneg %p257
      // Predicated region
      $region29: #{tpu_custom_call.1} parent=5 // pred_check
        _
      $region30: #{tpu_custom_call.1} parent=5 // pred_check_branch
        %260 = sbr.rel (%p257) target = $region32
      $region31: #{tpu_custom_call.1} parent=5 // pred_region
        %s261 = ssub.s32 %s18, 1
        %s262 = sand.u32 %s47, 1
        %s263 = scalar_lea.sflag [#allocation7], %s262
        %s264 = sand.u32 %s47, 1
        %s265 = smul.addr %s264, 16
        %s266 = scalar_lea.vmem [#allocation6], %s265
        // Predicated region
        $region33: #{tpu_custom_call.1} parent=31 // pred_check
          %p267 = pneg %p60
        $region34: #{tpu_custom_call.1} parent=31 // pred_check_branch
          %269 = sbr.rel (%p267) target = $region36
        $region35: #{tpu_custom_call.1} parent=31 // pred_region
          %270 = dma.done %s263, 256
        $region36: #{tpu_custom_call.1} parent=31 // pred_fallthru
          _
        %s271 = sand.u32 %s23, 1
        %s272 = scalar_lea.sflag [#allocation10], %s271
        %s273 = sand.u32 %s77, 1
        %s274 = smul.addr %s273, 4
        %s275 = scalar_lea.vmem [#allocation9], %s274
        // Predicated region
        $region37: #{tpu_custom_call.1} parent=31 // pred_check
          %p276 = pneg %p90
        $region38: #{tpu_custom_call.1} parent=31 // pred_check_branch
          %278 = sbr.rel (%p276) target = $region40
        $region39: #{tpu_custom_call.1} parent=31 // pred_region
          %279 = dma.done %s272, 64
        $region40: #{tpu_custom_call.1} parent=31 // pred_fallthru
          _
        %s280 = sand.u32 %s23, 1
        %s281 = scalar_lea.sflag [#allocation10], %s280
        %s282 = sand.u32 %s107, 1
        %s283 = smul.addr %s282, 16
        %s284 = scalar_lea.vmem [#allocation11], %s283
        // Predicated region
        $region41: #{tpu_custom_call.1} parent=31 // pred_check
          %p285 = pneg %p120
        $region42: #{tpu_custom_call.1} parent=31 // pred_check_branch
          %287 = sbr.rel (%p285) target = $region44
        $region43: #{tpu_custom_call.1} parent=31 // pred_region
          %288 = dma.done %s281, 256
        $region44: #{tpu_custom_call.1} parent=31 // pred_fallthru
          _
        %s289 = sand.u32 %s47, 1
        %s290 = scalar_lea.sflag [#allocation7], %s289
        %s291 = sand.u32 %s47, 1
        %s292 = smul.addr %s291, 16
        %s293 = scalar_lea.vmem [#allocation6], %s292
        %p294 = pneg %p60
        %p295 = pneg %p57
        %s296 = sand.u32 %s23, 1
        %s297 = scalar_lea.sflag [#allocation10], %s296
        %s298 = sand.u32 %s77, 1
        %s299 = smul.addr %s298, 4
        %s300 = scalar_lea.vmem [#allocation9], %s299
        %p301 = pneg %p90
        %p302 = pneg %p87
        %s303 = sand.u32 %s23, 1
        %s304 = scalar_lea.sflag [#allocation10], %s303
        %s305 = sand.u32 %s107, 1
        %s306 = smul.addr %s305, 16
        %s307 = scalar_lea.vmem [#allocation11], %s306
        %p308 = pneg %p120
        %p309 = pneg %p117
        %p310 = pneg %p146
        %p311 = pneg %p143
        %p312 = pneg %p172
        %p313 = pneg %p169
        %p314 = scmp.lt.s32.totalorder %s27, 0
        %s315 = scalar_select %p314, %s27, 0
        %s316 = smul.addr %s315, 4
        %s317 = scalar_lea.vmem %s4, %s316
        %s318 = smul.u32 %s27, 2
        %s319 = sadd.s32 %s318, %s28
        %s320 = smul.u32 %s27, 2
        %s321 = sadd.s32 %s320, %s28
        %s322 = smul.u32 %s27, 2
        %s323 = sadd.s32 %s322, %s28
        %p324 = scmp.lt.s32.totalorder %s27, 0
        %s325 = scalar_select %p324, %s27, 0
        %s326 = smul.addr %s325, 4
        %s327 = scalar_lea.vmem %s4, %s326
        %p328 = scmp.eq.s32.totalorder %s28, 0
        // Predicated region
        $region45: #{tpu_custom_call.1} parent=31 // pred_check
          %p329 = pneg %p328
        $region46: #{tpu_custom_call.1} parent=31 // pred_check_branch
          %331 = sbr.rel (%p329) target = $region48
        $region47: #{tpu_custom_call.1} parent=31 // pred_region
          %332 = vst [vmem:[#allocation2] sm:$0xf] 0.0
          %333 = vst [vmem:[#allocation3] sm:$0xf] 0.0
          %334 = vst [vmem:[#allocation4] sm:$0xf] 0.0
          %335 = vst [vmem:[#allocation5] sm:$0xf] 0.0
        $region48: #{tpu_custom_call.1} parent=31 // pred_fallthru
          _
        %v336 = vld [vmem:[%s266] sm:$0xf]
        %v337 = vld [vmem:[%s266 + $0x4] sm:$0xf]
        %v338 = vld [vmem:[%s266 + $0x8] sm:$0xf]
        %v339 = vld [vmem:[%s266 + $0xc] sm:$0xf]
        %v340 = vld [vmem:[%s275] sm:$0xf]
        %v341 = vld [vmem:[%s284] sm:$0xf]
        %v342 = vld [vmem:[%s284 + $0x4] sm:$0xf]
        %v343 = vld [vmem:[%s284 + $0x8] sm:$0xf]
        %v344 = vld [vmem:[%s284 + $0xc] sm:$0xf]
        %vm345 = vcmask 1043456
        %v346 = vsel %vm345, %v336, -inf
        %v347 = vrot.slane %v346, 4
        %v348 = vmax.f32 %v346, %v347
        %v349 = vrot.slane %v348, 2
        %v350 = vmax.f32 %v348, %v349
        %v351 = vrot.slane %v350, 1
        %v352 = vmax.f32 %v350, %v351
        %v353 = vsel %vm345, %v337, -inf
        %v354 = vrot.slane %v353, 4
        %v355 = vmax.f32 %v353, %v354
        %v356 = vrot.slane %v355, 2
        %v357 = vmax.f32 %v355, %v356
        %v358 = vrot.slane %v357, 1
        %v359 = vmax.f32 %v357, %v358
        %v360 = vsel %vm345, %v338, -inf
        %v361 = vrot.slane %v360, 4
        %v362 = vmax.f32 %v360, %v361
        %v363 = vrot.slane %v362, 2
        %v364 = vmax.f32 %v362, %v363
        %v365 = vrot.slane %v364, 1
        %v366 = vmax.f32 %v364, %v365
        %v367 = vsel %vm345, %v339, -inf
        %v368 = vrot.slane %v367, 4
        %v369 = vmax.f32 %v367, %v368
        %v370 = vrot.slane %v369, 2
        %v371 = vmax.f32 %v369, %v370
        %v372 = vrot.slane %v371, 1
        %v373 = vmax.f32 %v371, %v372
        %v374 = vsub.f32 %v336, %v352
        %v375 = vsub.f32 %v337, %v359
        %v376 = vsub.f32 %v338, %v366
        %v377 = vsub.f32 %v339, %v373
        %v378 = vmul.f32 %v374, 1.442695
        %v379 = vpow.pop %v378
        %v380 = vmul.f32 %v375, 1.442695
        %v381 = vpow.pop %v380
        %v382 = vmul.f32 %v376, 1.442695
        %v383 = vpow.pop %v382
        %v384 = vmul.f32 %v377, 1.442695
        %v385 = vpow.pop %v384
        %v386 = vsel %vm345, %v379, 0.0
        %v387 = vrot.slane %v386, 4
        %v388 = vadd.f32 %v386, %v387
        %v389 = vrot.slane %v388, 2
        %v390 = vadd.f32 %v388, %v389
        %v391 = vrot.slane %v390, 1
        %v392 = vadd.f32 %v390, %v391
        %v393 = vsel %vm345, %v381, 0.0
        %v394 = vrot.slane %v393, 4
        %v395 = vadd.f32 %v393, %v394
        %v396 = vrot.slane %v395, 2
        %v397 = vadd.f32 %v395, %v396
        %v398 = vrot.slane %v397, 1
        %v399 = vadd.f32 %v397, %v398
        %v400 = vsel %vm345, %v383, 0.0
        %v401 = vrot.slane %v400, 4
        %v402 = vadd.f32 %v400, %v401
        %v403 = vrot.slane %v402, 2
        %v404 = vadd.f32 %v402, %v403
        %v405 = vrot.slane %v404, 1
        %v406 = vadd.f32 %v404, %v405
        %v407 = vsel %vm345, %v385, 0.0
        %v408 = vrot.slane %v407, 4
        %v409 = vadd.f32 %v407, %v408
        %v410 = vrot.slane %v409, 2
        %v411 = vadd.f32 %v409, %v410
        %v412 = vrot.slane %v411, 1
        %v413 = vadd.f32 %v411, %v412
        %v414 = vrcp.pop %v392
        %v415 = vmul.f32 1.0, %v414
        %v416 = vrcp.pop %v399
        %v417 = vmul.f32 1.0, %v416
        %v418 = vrcp.pop %v406
        %v419 = vmul.f32 1.0, %v418
        %v420 = vrcp.pop %v413
        %v421 = vmul.f32 1.0, %v420
        %v422 = vmul.f32 %v379, %v415
        %v423 = vmul.f32 %v381, %v417
        %v424 = vmul.f32 %v383, %v419
        %v425 = vmul.f32 %v385, %v421
        %v426 = vlaneseq
        %v427 = vshrl.u32 %v426, 7
        %v429 = vunpack.c.l.s4 1966171168
        %v430 = vunpack.c.0.s8 %v429
        %v431 = vlaneseq
        %v432 = vshrl.u32 %v431, 7
        %v433 = vsub.s32 %v430, %v432
        %v434 = vrot.slane %v340, %v433
        %v435 = vcombine.high %v434, %v434
        %v437 = vunpack.c.l.s4 1966171168
        %v438 = vunpack.c.0.s8 %v437
        %v439 = vlaneseq
        %v440 = vshrl.u32 %v439, 7
        %v441 = vsub.s32 %v438, %v440
        %v442 = vrot.slane %v434, %v441
        %v444 = vunpack.c.l.s4 1966171168
        %v445 = vunpack.c.0.s8 %v444
        %v446 = vlaneseq
        %v447 = vshrl.u32 %v446, 7
        %v448 = vsub.s32 %v445, %v447
        %v449 = vrot.slane %v435, %v448
        %v450 = vcombine.high %v442, %v442
        %v451 = vcombine.high %v449, %v449
        %v452 = vlaneseq
        %v453 = vshrl.u32 %v452, 7
        %v454 = vsub.s32 0, %v453
        %v455 = vrot.slane %v442, %v454
        %v456 = vlaneseq
        %v457 = vshrl.u32 %v456, 7
        %v458 = vsub.s32 0, %v457
        %v459 = vrot.slane %v449, %v458
        %v460 = vlaneseq
        %v461 = vshrl.u32 %v460, 7
        %v462 = vsub.s32 0, %v461
        %v463 = vrot.slane %v450, %v462
        %v464 = vlaneseq
        %v465 = vshrl.u32 %v464, 7
        %v466 = vsub.s32 0, %v465
        %v467 = vrot.slane %v451, %v466
        %vm468 = vcmp.eq.s32.totalorder %v455, %v427
        %vm469 = vcmp.eq.s32.totalorder %v459, %v427
        %vm470 = vcmp.eq.s32.totalorder %v463, %v427
        %vm471 = vcmp.eq.s32.totalorder %v467, %v427
        %v472 = vsel %vm468, 1, 0
        %v473 = vsel %vm469, 1, 0
        %v474 = vsel %vm470, 1, 0
        %v475 = vsel %vm471, 1, 0
        %v476 = vcvt.s32.f32 %v472
        %v477 = vcvt.s32.f32 %v473
        %v478 = vcvt.s32.f32 %v474
        %v479 = vcvt.s32.f32 %v475
        %v480 = vmul.f32 %v422, %v476
        %v481 = vmul.f32 %v423, %v477
        %v482 = vmul.f32 %v424, %v478
        %v483 = vmul.f32 %v425, %v479
        %v484 = vsel %vm345, %v480, 0.0
        %v485 = vrot.slane %v484, 4
        %v486 = vadd.f32 %v484, %v485
        %v487 = vrot.slane %v486, 2
        %v488 = vadd.f32 %v486, %v487
        %v489 = vrot.slane %v488, 1
        %v490 = vadd.f32 %v488, %v489
        %v491 = vsel %vm345, %v481, 0.0
        %v492 = vrot.slane %v491, 4
        %v493 = vadd.f32 %v491, %v492
        %v494 = vrot.slane %v493, 2
        %v495 = vadd.f32 %v493, %v494
        %v496 = vrot.slane %v495, 1
        %v497 = vadd.f32 %v495, %v496
        %v498 = vsel %vm345, %v482, 0.0
        %v499 = vrot.slane %v498, 4
        %v500 = vadd.f32 %v498, %v499
        %v501 = vrot.slane %v500, 2
        %v502 = vadd.f32 %v500, %v501
        %v503 = vrot.slane %v502, 1
        %v504 = vadd.f32 %v502, %v503
        %v505 = vsel %vm345, %v483, 0.0
        %v506 = vrot.slane %v505, 4
        %v507 = vadd.f32 %v505, %v506
        %v508 = vrot.slane %v507, 2
        %v509 = vadd.f32 %v507, %v508
        %v510 = vrot.slane %v509, 1
        %v511 = vadd.f32 %v509, %v510
        %v512 = vadd.f32 %v490, 1e-06
        %v513 = vadd.f32 %v497, 1e-06
        %v514 = vadd.f32 %v504, 1e-06
        %v515 = vadd.f32 %v511, 1e-06
        %v516 = vlog2.pop %v512
        %v517 = vmul.f32 %v516, 0.6931472
        %v518 = vlog2.pop %v513
        %v519 = vmul.f32 %v518, 0.6931472
        %v520 = vlog2.pop %v514
        %v521 = vmul.f32 %v520, 0.6931472
        %v522 = vlog2.pop %v515
        %v523 = vmul.f32 %v522, 0.6931472
        %v524 = vrcp.pop 0.6931472
        %v525 = vmul.f32 %v517, %v524
        %v526 = vmul.f32 %v519, %v524
        %v527 = vmul.f32 %v521, %v524
        %v528 = vmul.f32 %v523, %v524
        %v529 = vsub.f32 0.0, %v525
        %v530 = vsub.f32 0.0, %v526
        %v531 = vsub.f32 0.0, %v527
        %v532 = vsub.f32 0.0, %v528
        %vm533 = vcmp.eq.s32.totalorder %v340, 0
        %v534 = vsub.f32 1.0, %v490
        %v535 = vsub.f32 1.0, %v497
        %v536 = vsub.f32 1.0, %v504
        %v537 = vsub.f32 1.0, %v511
        %v538 = vmul.f32 %v534, %v534
        %v539 = vmul.f32 %v535, %v535
        %v540 = vmul.f32 %v536, %v536
        %v541 = vmul.f32 %v537, %v537
        %vm546 = vcmask 1041409
        %v547 = vsel %vm546, %v539, %v538
        %vm548 = vcmask 1042434
        %v549 = vsel %vm548, %v540, %v547
        %vm550 = vcmask 1043459
        %v551 = vsel %vm550, %v541, %v549
        %v553 = vsel %vm533, %v551, 1.0
        %v558 = vsel %vm546, %v530, %v529
        %v559 = vsel %vm548, %v531, %v558
        %v560 = vsel %vm550, %v532, %v559
        %v562 = vmul.f32 %v553, %v560
        %v563 = vsel %vm345, %v341, 0.0
        %v564 = vsel %vm345, %v342, 0.0
        %v565 = vadd.f32 %v563, %v564
        %v566 = vsel %vm345, %v343, 0.0
        %v567 = vadd.f32 %v565, %v566
        %v568 = vsel %vm345, %v344, 0.0
        %v569 = vadd.f32 %v567, %v568
        %v570 = vld [vmem:[#allocation2] sm:$0xf]
        %v571 = vmul.f32 %v569, %v562
        %v572 = vadd.f32 %v570, %v571
        %573 = vst [vmem:[#allocation2] sm:$0xf] %v572
        %v574 = vadd.f32 %v484, %v491
        %v575 = vadd.f32 %v574, %v498
        %v576 = vadd.f32 %v575, %v505
        %v577 = vsel %vm345, %v422, 0.0
        %v578 = vsel %vm345, %v423, 0.0
        %v579 = vadd.f32 %v577, %v578
        %v580 = vsel %vm345, %v424, 0.0
        %v581 = vadd.f32 %v579, %v580
        %v582 = vsel %vm345, %v425, 0.0
        %v583 = vadd.f32 %v581, %v582
        %v584 = vsel %vm345, %v476, 0.0
        %v585 = vsel %vm345, %v477, 0.0
        %v586 = vadd.f32 %v584, %v585
        %v587 = vsel %vm345, %v478, 0.0
        %v588 = vadd.f32 %v586, %v587
        %v589 = vsel %vm345, %v479, 0.0
        %v590 = vadd.f32 %v588, %v589
        %v591 = vld [vmem:[#allocation3] sm:$0xf]
        %v592 = vadd.f32 %v591, %v576
        %593 = vst [vmem:[#allocation3] sm:$0xf] %v592
        %v594 = vld [vmem:[#allocation4] sm:$0xf]
        %v595 = vadd.f32 %v594, %v583
        %596 = vst [vmem:[#allocation4] sm:$0xf] %v595
        %v597 = vld [vmem:[#allocation5] sm:$0xf]
        %v598 = vadd.f32 %v597, %v590
        %599 = vst [vmem:[#allocation5] sm:$0xf] %v598
        %p600 = scmp.eq.s32.totalorder %s28, 1
        // Predicated region
        $region49: #{tpu_custom_call.1} parent=31 // pred_check
          %p601 = pneg %p600
        $region50: #{tpu_custom_call.1} parent=31 // pred_check_branch
          %603 = sbr.rel (%p601) target = $region52
        $region51: #{tpu_custom_call.1} parent=31 // pred_region
          %v604 = vld [vmem:[#allocation2] sm:$0xf]
          %v605 = vsel %vm345, %v604, 0.0
          %606 = vadd.xlane.f32.xlu0 %v605
          %v607 = vpop.xlane.xlu0 %606
          %v608 = vsel %vm345, %v607, 0.0
          %v609 = vrot.slane %v608, 4
          %v610 = vadd.f32 %v608, %v609
          %v611 = vrot.slane %v610, 2
          %v612 = vadd.f32 %v610, %v611
          %v613 = vrot.slane %v612, 1
          %v614 = vadd.f32 %v612, %v613
          %vm615 = vcmask 0
          %616 = vst.msk [vmem:[#allocation12] sm:$0x1] %vm615, %v614
          %v617 = vld [vmem:[#allocation3] sm:$0xf]
          %v618 = vsel %vm345, %v617, 0.0
          %619 = vadd.xlane.f32.xlu0 %v618
          %v620 = vpop.xlane.xlu0 %619
          %v621 = vld [vmem:[#allocation4] sm:$0xf]
          %v622 = vsel %vm345, %v621, 0.0
          %623 = vadd.xlane.f32.xlu0 %v622
          %v624 = vpop.xlane.xlu0 %623
          %v625 = vld [vmem:[#allocation5] sm:$0xf]
          %v626 = vsel %vm345, %v625, 0.0
          %627 = vadd.xlane.f32.xlu0 %v626
          %v628 = vpop.xlane.xlu0 %627
          %vm629 = vcmask 7168
          %v630 = vsel %vm629, %v620, %v624
          %vm631 = vcmask 15360
          %v632 = vsel %vm631, %v630, %v628
          %vm633 = vcmask 19456
          %634 = vst.msk [vmem:[%s327] sm:$0xf] %vm633, %v632
        $region52: #{tpu_custom_call.1} parent=31 // pred_fallthru
          _
        %p635 = scmp.lt.s32.totalorder %s27, 0
        %s636 = scalar_select %p635, %s27, 0
        %s637 = smul.addr %s636, 4
        %s638 = scalar_lea.vmem %s4, %s637
        // Predicated region
        $region53: #{tpu_custom_call.1} parent=31 // pred_check
          %p639 = pneg %p143
        $region54: #{tpu_custom_call.1} parent=31 // pred_check_branch
          %641 = sbr.rel (%p639) target = $region56
        $region55: #{tpu_custom_call.1} parent=31 // pred_region
          %s643 = ssub.s32 16, 16
          %644 = vsyncadd [#allocation8], %s643
          %s645 = smul.addr %s27, 16
          %s646 = scalar_lea.hbm %s3, %s645
          %s648 = sshll.u32 [#allocation12], 4
          %s649 = int_to_ptr.vmem [resolvable:$true] %s648
          %651 = dma.vmem_to_hbm [thread:$0]  %s649, 16, %s646, [#allocation8]
        $region56: #{tpu_custom_call.1} parent=31 // pred_fallthru
          _
        // Predicated region
        $region57: #{tpu_custom_call.1} parent=31 // pred_check
          %p652 = pneg %p169
        $region58: #{tpu_custom_call.1} parent=31 // pred_check_branch
          %654 = sbr.rel (%p652) target = $region60
        $region59: #{tpu_custom_call.1} parent=31 // pred_region
          _
        $region60: #{tpu_custom_call.1} parent=31 // pred_fallthru
          _
        // Predicated region
        $region61: #{tpu_custom_call.1} parent=31 // pred_check
          %p655 = pneg %p143
        $region62: #{tpu_custom_call.1} parent=31 // pred_check_branch
          %657 = sbr.rel (%p655) target = $region64
        $region63: #{tpu_custom_call.1} parent=31 // pred_region
          %658 = dma.done [#allocation8], 16
        $region64: #{tpu_custom_call.1} parent=31 // pred_fallthru
          _
        // Predicated region
        $region65: #{tpu_custom_call.1} parent=31 // pred_check
          %p659 = pneg %p169
        $region66: #{tpu_custom_call.1} parent=31 // pred_check_branch
          %661 = sbr.rel (%p659) target = $region68
        $region67: #{tpu_custom_call.1} parent=31 // pred_region
          %p662 = scmp.lt.s32.totalorder %s27, 0
          %s663 = scalar_select %p662, %s27, 0
          %s664 = smul.addr %s663, 4
          %s665 = scalar_lea.vmem %s4, %s664
        $region68: #{tpu_custom_call.1} parent=31 // pred_fallthru
          _
      $region32: #{tpu_custom_call.1} parent=5 // pred_fallthru
        _
      %p666 = scmp.le.s32.totalorder 2, %s18
      // Predicated region
      $region69: #{tpu_custom_call.1} parent=5 // pred_check
        %p667 = pneg %p666
      $region70: #{tpu_custom_call.1} parent=5 // pred_check_branch
        %669 = sbr.rel (%p667) target = $region72
      $region71: #{tpu_custom_call.1} parent=5 // pred_region
        %s670 = ssub.s32 %s18, 2
      $region72: #{tpu_custom_call.1} parent=5 // pred_fallthru
        _
    $region6: #{tpu_custom_call.1} parent=1 // loop_footer
      %s22 = sadd.s32 1, %s18
    $region7: #{tpu_custom_call.1} parent=1 // loop_footer_branch
      %17 = sbr.rel target = $region3
    $region8: #{tpu_custom_call.1} parent=1 // loop_exit
      _
    %671 = vsyncpa [#allocation7], 1
    %s672 = scalar_lea.sflag [#allocation7], 1
    %673 = vsyncpa %s672, 1
    %674 = vsyncpa [#allocation10], 1
    %s675 = scalar_lea.sflag [#allocation10], 1
    %676 = vsyncpa %s675, 1
    %677 = vsyncpa [#allocation8], 1
    %s678 = scalar_lea.sflag [#allocation8], 1
    %679 = vsyncpa %s678, 1

</llo_original>
